<compile_context>
chip_gen: v6e
topology: v6e:2x2x1
jax: 0.10.0
libtpu: 0.0.40
codegen_flags: <defaults>
</compile_context>

<pallas_src>
import functools

import jax
import jax.numpy as jnp
from jax.experimental import pallas as pl
from jax.experimental.pallas import tpu as pltpu

# Module hyper-parameters (standard values for this snake-agent Q-net).
INPUT_SIZE = 11
HIDDEN_SIZE = 256
OUTPUT_SIZE = 3

MAX_BATCH_TILE = 8192     # caps per-tile VMEM (~24-40 MiB f32 incl. lane padding)
SINGLE_TILE_MAX = 1024    # below this, one full-batch tile (serving path)


def _round_up(n, m):
    return ((n + m - 1) // m) * m


def _choose_batch_tile(batch: int) -> int:
    """Batch-tile rows: full batch for small inputs; otherwise >=2 tiles
    (v7x megacore), each <= MAX_BATCH_TILE, 8-row granular to hug the batch."""
    batch = max(int(batch), 1)
    if batch <= SINGLE_TILE_MAX:
        return batch                              # block dim == full array dim
    n_tiles = max(2, pl.cdiv(batch, MAX_BATCH_TILE))
    return _round_up(pl.cdiv(batch, n_tiles), 8)


def _vpu_has_native_bf16() -> bool:
    """bf16 elementwise pays off on v6e / v7x; v2-v5 VPUs have no bf16 ALUs."""
    try:
        kind = jax.devices()[0].device_kind.lower()
    except Exception:
        return False
    return not any(v in kind for v in ("v2", "v3", "v4", "v5"))


def qnet_kernel(x_ref, w1_ref, b1_ref, w2_ref, b2_ref, o_ref, *, op_dtype, h_dtype):
    """One (tb, IN) batch tile -> (tb, OUT) Q-values.

    x_ref : (tb, IN)    input dtype; cast to op_dtype in-kernel (cheap, 12 lanes)
    w1_ref: (IN, HID)   op_dtype   (VMEM-resident across grid steps)
    b1_ref: (1, HID)    h_dtype
    w2_ref: (HID, OUT)  op_dtype
    b2_ref: (1, OUT)    f32
    o_ref : (tb, OUT)   f32        (PyTorch batch-major layout, no transposes)
    """
    x = x_ref[...].astype(op_dtype)
    # Layer 1 on the MXU: (tb, IN) @ (IN, HID) -> (tb, HID).  f32 accumulation
    # inside the MXU; result emitted in h_dtype (bf16 on bf16-native VPUs).
    h = jnp.dot(x, w1_ref[...], preferred_element_type=h_dtype)
    h = jnp.maximum(h + b1_ref[...], 0.0)          # bias + ReLU on the VPU
    # Layer 2: (tb, HID) @ (HID, OUT) -> (tb, OUT), f32 accumulate + bias.
    y = jnp.dot(h, w2_ref[...], preferred_element_type=jnp.float32)
    o_ref[...] = (y + b2_ref[...]).astype(o_ref.dtype)


@functools.partial(jax.jit, static_argnames=("use_bf16", "bf16_epilogue"))
def qnet_forward(x, w1, b1, w2, b2, *, use_bf16=False, bf16_epilogue=None):
    """Forward pass. x: (batch, INPUT_SIZE). Returns (batch, OUTPUT_SIZE) f32.

    Weights use the PyTorch layout: w1 (HIDDEN, INPUT), b1 (HIDDEN,),
    w2 (OUTPUT, HIDDEN), b2 (OUTPUT,).

    use_bf16: bf16 MXU operands (halves weight read traffic; x stays in its
    stored dtype and is cast in-kernel to avoid an extra HBM pass).  On
    bf16-native VPUs (v6e/v7x) the hidden epilogue also runs in bf16.
    """
    batch = x.shape[0]
    if bf16_epilogue is None:
        bf16_epilogue = _vpu_has_native_bf16()
    op_dtype = jnp.bfloat16 if use_bf16 else jnp.float32
    h_dtype = jnp.bfloat16 if (use_bf16 and bf16_epilogue) else jnp.float32

    # Tiny weight-side prep (~3K params): MXU-native (K, N) orientation.
    w1_t = w1.T.astype(op_dtype)                        # (IN, HID)
    w2_t = w2.T.astype(op_dtype)                        # (HID, OUT)
    b1_r = b1.reshape(1, HIDDEN_SIZE).astype(h_dtype)   # (1, HID)
    b2_r = b2.reshape(1, OUTPUT_SIZE).astype(jnp.float32)

    tb = _choose_batch_tile(batch)
    grid = (pl.cdiv(batch, tb),)

    flops = 2 * batch * (INPUT_SIZE * HIDDEN_SIZE + HIDDEN_SIZE * OUTPUT_SIZE)
    bytes_accessed = int(
        batch * INPUT_SIZE * x.dtype.itemsize
        + (INPUT_SIZE + OUTPUT_SIZE) * HIDDEN_SIZE * jnp.dtype(op_dtype).itemsize
        + HIDDEN_SIZE * jnp.dtype(h_dtype).itemsize
        + OUTPUT_SIZE * 4
        + batch * OUTPUT_SIZE * 4)

    return pl.pallas_call(
        functools.partial(qnet_kernel, op_dtype=op_dtype, h_dtype=h_dtype),
        out_shape=jax.ShapeDtypeStruct((batch, OUTPUT_SIZE), jnp.float32),
        grid_spec=pltpu.PrefetchScalarGridSpec(
            num_scalar_prefetch=0,
            grid=grid,
            in_specs=[
                # Batch tile of x in natural layout (batch on sublanes / M dim).
                pl.BlockSpec((tb, INPUT_SIZE), lambda i: (i, 0)),
                # Weights / biases: constant index maps -> VMEM-resident.
                pl.BlockSpec((INPUT_SIZE, HIDDEN_SIZE), lambda i: (0, 0)),
                pl.BlockSpec((1, HIDDEN_SIZE), lambda i: (0, 0)),
                pl.BlockSpec((HIDDEN_SIZE, OUTPUT_SIZE), lambda i: (0, 0)),
                pl.BlockSpec((1, OUTPUT_SIZE), lambda i: (0, 0)),
            ],
            out_specs=pl.BlockSpec((tb, OUTPUT_SIZE), lambda i: (i, 0)),
        ),
        compiler_params=pltpu.CompilerParams(
            dimension_semantics=("parallel",),      # shard batch tiles across TCs
            vmem_limit_bytes=48 * 1024 * 1024,      # headroom even on v7x (64 MiB)
        ),
        cost_estimate=pl.CostEstimate(
            flops=flops, transcendentals=0, bytes_accessed=bytes_accessed),
    )(x, w1_t, b1_r, w2_t, b2_r)


def init_params(key):
    """Deterministic init matching nn.Linear's default U(-1/sqrt(fan_in), ...).

    Stored exactly like PyTorch: W (out_features, in_features), b (out_features,).
    """
    k1, k2, k3, k4 = jax.random.split(key, 4)
    bound1 = 1.0 / jnp.sqrt(jnp.float32(INPUT_SIZE))
    bound2 = 1.0 / jnp.sqrt(jnp.float32(HIDDEN_SIZE))
    w1 = jax.random.uniform(k1, (HIDDEN_SIZE, INPUT_SIZE), jnp.float32,
                            -bound1, bound1)
    b1 = jax.random.uniform(k2, (HIDDEN_SIZE,), jnp.float32, -bound1, bound1)
    w2 = jax.random.uniform(k3, (OUTPUT_SIZE, HIDDEN_SIZE), jnp.float32,
                            -bound2, bound2)
    b2 = jax.random.uniform(k4, (OUTPUT_SIZE,), jnp.float32, -bound2, bound2)
    return w1, b1, w2, b2


# TODO(synk): Linear_QNet.save() (torch.save checkpoint I/O) is host-side and
# has no Pallas equivalent; persist params with jax/numpy utilities instead.


if __name__ == "__main__":
    key = jax.random.PRNGKey(0)
    pkey, xkey = jax.random.split(key)
    w1, b1, w2, b2 = init_params(pkey)

    def ref_fwd(xv):
        return jnp.maximum(xv @ w1.T + b1, 0.0) @ w2.T + b2

    # --- small serving-like batch: single full-batch tile, grid of 1 ---
    batch = 2
    x = jax.random.normal(xkey, (batch, INPUT_SIZE), jnp.float32)
    out = jax.block_until_ready(qnet_forward(x, w1, b1, w2, b2))
    assert out.shape == (batch, OUTPUT_SIZE)
    assert jnp.allclose(out, ref_fwd(x), atol=5e-4, rtol=5e-4)

    # --- larger, non-divisible batch: 2 "parallel" grid steps (3000 -> 2x1504)
    #     with a masked partial edge block ---
    big_batch = 3000
    xb = jax.random.normal(jax.random.PRNGKey(1), (big_batch, INPUT_SIZE),
                           jnp.float32)
    out_big = jax.block_until_ready(qnet_forward(xb, w1, b1, w2, b2))
    assert out_big.shape == (big_batch, OUTPUT_SIZE)
    assert jnp.allclose(out_big, ref_fwd(xb), atol=5e-4, rtol=5e-4)

    # --- bf16 fast path (bf16 MXU operands; bf16 epilogue on v6e/v7x only) ---
    out_bf16 = jax.block_until_ready(
        qnet_forward(xb, w1, b1, w2, b2, use_bf16=True))
    assert jnp.allclose(out_bf16, ref_fwd(xb), atol=5e-2, rtol=5e-2)

    print("KERNEL_OK")
</pallas_src>

<mosaic_0001>
module attributes {stable_mosaic.version = 11 : i64} {
  func.func @qnet_kernel(%arg0: i32, %arg1: memref<2x11xf32, #tpu.memory_space<vmem>>, %arg2: memref<11x256xf32, #tpu.memory_space<vmem>>, %arg3: memref<1x256xf32, #tpu.memory_space<vmem>>, %arg4: memref<256x3xf32, #tpu.memory_space<vmem>>, %arg5: memref<1x3xf32, #tpu.memory_space<vmem>>, %arg6: memref<2x3xf32, #tpu.memory_space<vmem>>) attributes {dimension_semantics = [#tpu.dimension_semantics<parallel>], iteration_bounds = array<i64: 1>, scalar_prefetch = 0 : i64, scratch_operands = 0 : i64, tpu.core_type = #tpu.core_type<tc>, window_params = [{transform_indices = @transform_0, window_bounds = array<i64: 2, 11>}, {pipeline_mode = #tpu.pipeline_mode<synchronous>, transform_indices = @transform_1, window_bounds = array<i64: 11, 256>}, {pipeline_mode = #tpu.pipeline_mode<synchronous>, transform_indices = @transform_2, window_bounds = array<i64: 1, 256>}, {pipeline_mode = #tpu.pipeline_mode<synchronous>, transform_indices = @transform_3, window_bounds = array<i64: 256, 3>}, {pipeline_mode = #tpu.pipeline_mode<synchronous>, transform_indices = @transform_4, window_bounds = array<i64: 1, 3>}, {transform_indices = @transform_5, window_bounds = array<i64: 2, 3>}]} {
    %c0 = arith.constant 0 : index
    %c0_0 = arith.constant 0 : index
    %0 = vector.load %arg1[%c0, %c0_0] : memref<2x11xf32, #tpu.memory_space<vmem>>, vector<2x11xf32>
    %c0_1 = arith.constant 0 : index
    %c0_2 = arith.constant 0 : index
    %1 = vector.load %arg2[%c0_1, %c0_2] : memref<11x256xf32, #tpu.memory_space<vmem>>, vector<11x256xf32>
    %cst = arith.constant dense<0.000000e+00> : vector<2x256xf32>
    %2 = tpu.matmul %0, %1, %cst {dimension_numbers = #tpu.dot_dimension_numbers<[1], [0], [0], [1], [0, 0, 1, 1], [], []>} : vector<2x11xf32>, vector<11x256xf32>, vector<2x256xf32> -> vector<2x256xf32>
    %c0_3 = arith.constant 0 : index
    %c0_4 = arith.constant 0 : index
    %3 = vector.load %arg3[%c0_3, %c0_4] : memref<1x256xf32, #tpu.memory_space<vmem>>, vector<1x256xf32>
    %4 = vector.broadcast %3 : vector<1x256xf32> to vector<2x256xf32>
    %5 = arith.addf %2, %4 : vector<2x256xf32>
    %cst_5 = arith.constant 0.000000e+00 : f32
    %6 = vector.broadcast %cst_5 : f32 to vector<2x256xf32>
    %7 = arith.maximumf %5, %6 : vector<2x256xf32>
    %c0_6 = arith.constant 0 : index
    %c0_7 = arith.constant 0 : index
    %8 = vector.load %arg4[%c0_6, %c0_7] : memref<256x3xf32, #tpu.memory_space<vmem>>, vector<256x3xf32>
    %cst_8 = arith.constant dense<0.000000e+00> : vector<2x3xf32>
    %9 = tpu.matmul %7, %8, %cst_8 {dimension_numbers = #tpu.dot_dimension_numbers<[1], [0], [0], [1], [0, 0, 1, 1], [], []>} : vector<2x256xf32>, vector<256x3xf32>, vector<2x3xf32> -> vector<2x3xf32>
    %c0_9 = arith.constant 0 : index
    %c0_10 = arith.constant 0 : index
    %10 = vector.load %arg5[%c0_9, %c0_10] : memref<1x3xf32, #tpu.memory_space<vmem>>, vector<1x3xf32>
    %11 = vector.broadcast %10 : vector<1x3xf32> to vector<2x3xf32>
    %12 = arith.addf %9, %11 : vector<2x3xf32>
    %c0_11 = arith.constant 0 : index
    %c0_12 = arith.constant 0 : index
    %13 = vector.load %arg6[%c0_11, %c0_12] : memref<2x3xf32, #tpu.memory_space<vmem>>, vector<2x3xf32>
    tpu.vector_store %arg6[%c0_11, %c0_12], %12 {strides = array<i32>} : memref<2x3xf32, #tpu.memory_space<vmem>>, vector<2x3xf32>,
    return
  }
  func.func @transform_0(%arg0: i32) -> (i32, i32) {
    %c0_i32 = arith.constant 0 : i32
    %c0_i32_0 = arith.constant 0 : i32
    return %arg0, %c0_i32 : i32, i32
  }
  func.func @transform_1(%arg0: i32) -> (i32, i32) {
    %c0_i32 = arith.constant 0 : i32
    %c0_i32_0 = arith.constant 0 : i32
    %c0_i32_1 = arith.constant 0 : i32
    return %c0_i32, %c0_i32_0 : i32, i32
  }
  func.func @transform_2(%arg0: i32) -> (i32, i32) {
    %c0_i32 = arith.constant 0 : i32
    %c0_i32_0 = arith.constant 0 : i32
    %c0_i32_1 = arith.constant 0 : i32
    return %c0_i32, %c0_i32_0 : i32, i32
  }
  func.func @transform_3(%arg0: i32) -> (i32, i32) {
    %c0_i32 = arith.constant 0 : i32
    %c0_i32_0 = arith.constant 0 : i32
    %c0_i32_1 = arith.constant 0 : i32
    return %c0_i32, %c0_i32_0 : i32, i32
  }
  func.func @transform_4(%arg0: i32) -> (i32, i32) {
    %c0_i32 = arith.constant 0 : i32
    %c0_i32_0 = arith.constant 0 : i32
    %c0_i32_1 = arith.constant 0 : i32
    return %c0_i32, %c0_i32_0 : i32, i32
  }
  func.func @transform_5(%arg0: i32) -> (i32, i32) {
    %c0_i32 = arith.constant 0 : i32
    %c0_i32_0 = arith.constant 0 : i32
    return %arg0, %c0_i32 : i32, i32
  }
}

</mosaic_0001>

<llo_original>
// kernel: qnet_forward.1
$region0: #{qnet_forward.1}
  #allocation0 [shape = 'u32[]', space=smem, size = 0x4, offset = 0x4, fixed_abs, tag = 'smem constant byte address 0x4 - core index']
  #allocation1 [shape = 'u32[144,128]{1,0:T(1,128)}', space=vmem, size = 0x12000, scoped, tag = 'internal scratch']
  %s0 = inlined_call_operand.vmem [shape: f32[2,11], index: 0, kind: input, shape index: {}]
  %s1 = inlined_call_operand.vmem [shape: f32[11,256], index: 1, kind: input, shape index: {}]
  %s2 = inlined_call_operand.vmem [shape: f32[1,256], index: 2, kind: input, shape index: {}]
  %s3 = inlined_call_operand.vmem [shape: f32[256,3], index: 3, kind: input, shape index: {}]
  %s4 = inlined_call_operand.vmem [shape: f32[1,3], index: 4, kind: input, shape index: {}]
  %s5 = inlined_call_operand.hbm [shape: f32[2,3], index: 5, kind: output, shape index: {}]
  %s6 = sld [smem:[#allocation0]]
  $region30: #{qnet_forward.1} parent=0
    _
  %s8 = ssub.s32 1, %s6
  %s9 = scalar_select 0, %s8, %s6
  $region1: #{qnet_forward.1} parent=0
    #allocation2 [shape = 'u8[1024]{0}', space=vmem, size = 0x400, scoped, tag = 'output window, operand 0, single buffered']
    #allocation3 [shape = 's32[1]{0}', space=sflag, size = 0x4, scoped, tag = 'scoped memory for qnet_forward.1']
    %10 = vsyncpa [#allocation3], 0
    // Predicated region
    $region2: #{qnet_forward.1} parent=1 // pred_check
      _
    $region3: #{qnet_forward.1} parent=1 // pred_check_branch
      %12 = sbr.rel (0) target = $region5
    $region4: #{qnet_forward.1} parent=1 // pred_region
      _
    $region5: #{qnet_forward.1} parent=1 // pred_fallthru
      _
    // Predicated region
    $region6: #{qnet_forward.1} parent=1 // pred_check
      _
    $region7: #{qnet_forward.1} parent=1 // pred_check_branch
      %14 = sbr.rel (0) target = $region9
    $region8: #{qnet_forward.1} parent=1 // pred_region
      _
    $region9: #{qnet_forward.1} parent=1 // pred_fallthru
      _
    // Predicated region
    $region10: #{qnet_forward.1} parent=1 // pred_check
      _
    $region11: #{qnet_forward.1} parent=1 // pred_check_branch
      %16 = sbr.rel (0) target = $region13
    $region12: #{qnet_forward.1} parent=1 // pred_region
      _
    $region13: #{qnet_forward.1} parent=1 // pred_fallthru
      _
    // Predicated region
    $region14: #{qnet_forward.1} parent=1 // pred_check
      _
    $region15: #{qnet_forward.1} parent=1 // pred_check_branch
      %18 = sbr.rel (0) target = $region17
    $region16: #{qnet_forward.1} parent=1 // pred_region
      _
    $region17: #{qnet_forward.1} parent=1 // pred_fallthru
      _
    // Predicated region
    $region18: #{qnet_forward.1} parent=1 // pred_check
      _
    $region19: #{qnet_forward.1} parent=1 // pred_check_branch
      %20 = sbr.rel (0) target = $region21
    $region20: #{qnet_forward.1} parent=1 // pred_region
      _
    $region21: #{qnet_forward.1} parent=1 // pred_fallthru
      _
    %v21 = vld [vmem:[%s0] sm:$0x3]
    %v22 = vld [vmem:[%s1] sm:$0xff]
    %v23 = vld [vmem:[%s1 + $0x8] sm:$0xff]
    %v24 = vld [vmem:[%s1 + $0x10] sm:$0x7]
    %v25 = vld [vmem:[%s1 + $0x18] sm:$0x7]
    %v26 = vld [vmem:[%s2] sm:$0x3]
    %v28 = vlaneseq
    %v29 = vshrl.u32 %v28, 7
    %v30 = vsub.s32 0, %v29
    %v31 = vrot.slane %v26, %v30
    %v32 = vlaneseq
    %v33 = vshrl.u32 %v32, 7
    %v34 = vsub.s32 1, %v33
    %v35 = vrot.slane %v26, %v34
    %vm38 = vcmask 89088
    %v40 = vsel %vm38, %v21, 0
    %vm42 = vcmask 1042432
    %v44 = vsel %vm42, %v24, 0
    %v47 = vsel %vm42, %v25, 0
    %49 = vmatprep.subr.mxu0 0.0
    %50 = vmatpush1.msra.mxu0 0.0
    %51 = vmatprep.subr.mxu0 0.0
    %52 = vmatpush1.msra.mxu0 0.0
    %53 = vmatprep.subr.mxu0 0.0
    %54 = vmatpush1.msra.mxu0 0.0
    %55 = vmatprep.subr.mxu0 0.0
    %56 = vmatpush1.msra.mxu0 0.0
    %57 = vmatprep.subr.mxu0 0.0
    %58 = vmatpush1.msra.mxu0 0.0
    %59 = vmatprep.subr.mxu0 0.0
    %60 = vmatpush1.msra.mxu0 0.0
    %61 = vmatprep.subr.mxu0 0.0
    %62 = vmatpush1.msra.mxu0 0.0
    %63 = vmatprep.subr.mxu0 0.0
    %64 = vmatpush1.msra.mxu0 0.0
    %65 = vmatprep.subr.mxu0 0.0
    %66 = vmatpush1.msra.mxu0 0.0
    %67 = vmatprep.subr.mxu0 0.0
    %68 = vmatpush1.msra.mxu0 0.0
    %69 = vmatprep.subr.mxu0 0.0
    %70 = vmatpush1.msra.mxu0 0.0
    %71 = vmatprep.subr.mxu0 0.0
    %72 = vmatpush1.msra.mxu0 0.0
    %73 = vmatprep.subr.mxu0 0.0
    %74 = vmatpush1.msra.mxu0 0.0
    %75 = vmatprep.subr.mxu0 0.0
    %76 = vmatpush1.msra.mxu0 0.0
    %77 = vmatprep.subr.mxu0 %v47
    %78 = vmatpush1.msra.mxu0 %v44
    %79 = vmatprep.subr.mxu0 %v23
    %80 = vmatpush1.msra.mxu0 %v22
    %81 = vmatprep.subr.mxu0 0.0
    %82 = vmatpush2.msra.mxu0 0.0
    %83 = vmatprep.subr.mxu0 0.0
    %84 = vmatpush2.msra.mxu0 0.0
    %85 = vmatprep.subr.mxu0 0.0
    %86 = vmatpush2.msra.mxu0 0.0
    %87 = vmatprep.subr.mxu0 0.0
    %88 = vmatpush2.msra.mxu0 0.0
    %89 = vmatprep.subr.mxu0 0.0
    %90 = vmatpush2.msra.mxu0 0.0
    %91 = vmatprep.subr.mxu0 0.0
    %92 = vmatpush2.msra.mxu0 0.0
    %93 = vmatprep.subr.mxu0 0.0
    %94 = vmatpush2.msra.mxu0 0.0
    %95 = vmatprep.subr.mxu0 0.0
    %96 = vmatpush2.msra.mxu0 0.0
    %97 = vmatprep.subr.mxu0 0.0
    %98 = vmatpush2.msra.mxu0 0.0
    %99 = vmatprep.subr.mxu0 0.0
    %100 = vmatpush2.msra.mxu0 0.0
    %101 = vmatprep.subr.mxu0 0.0
    %102 = vmatpush2.msra.mxu0 0.0
    %103 = vmatprep.subr.mxu0 0.0
    %104 = vmatpush2.msra.mxu0 0.0
    %105 = vmatprep.subr.mxu0 0.0
    %106 = vmatpush2.msra.mxu0 0.0
    %107 = vmatprep.subr.mxu0 0.0
    %108 = vmatpush2.msra.mxu0 0.0
    %109 = vmatprep.subr.mxu0 0.0
    %110 = vmatpush2.msra.mxu0 0.0
    %111 = vmatprep.subr.mxu0 0.0
    %112 = vmatpush2.msra.mxu0 0.0
    %113 = vmatprep.mubr.f32.mxu0 0.0
    %114 = vmatmul.mubr.f32.gmra.mxu0 %v40
    %v115 = vpop.f32.mrf.mxu0
    %v116 = vadd.f32 %v31, %v115
    %v117 = vpop.f32.mrf.mxu0
    %v118 = vadd.f32 %v35, %v117
    %119 = vdwg.mxu0
    %v120 = vmax.f32 %v116, 0.0
    %v121 = vmax.f32 %v118, 0.0
    %v122 = vld [vmem:[%s3] sm:$0xff]
    %v123 = vld [vmem:[%s3 + $0x8] sm:$0xff]
    %v124 = vld [vmem:[%s3 + $0x10] sm:$0xff]
    %v125 = vld [vmem:[%s3 + $0x18] sm:$0xff]
    %v126 = vld [vmem:[%s3 + $0x20] sm:$0xff]
    %v127 = vld [vmem:[%s3 + $0x28] sm:$0xff]
    %v128 = vld [vmem:[%s3 + $0x30] sm:$0xff]
    %v129 = vld [vmem:[%s3 + $0x38] sm:$0xff]
    %v130 = vld [vmem:[%s3 + $0x40] sm:$0xff]
    %v131 = vld [vmem:[%s3 + $0x48] sm:$0xff]
    %v132 = vld [vmem:[%s3 + $0x50] sm:$0xff]
    %v133 = vld [vmem:[%s3 + $0x58] sm:$0xff]
    %v134 = vld [vmem:[%s3 + $0x60] sm:$0xff]
    %v135 = vld [vmem:[%s3 + $0x68] sm:$0xff]
    %v136 = vld [vmem:[%s3 + $0x70] sm:$0xff]
    %v137 = vld [vmem:[%s3 + $0x78] sm:$0xff]
    %v138 = vld [vmem:[%s3 + $0x80] sm:$0xff]
    %v139 = vld [vmem:[%s3 + $0x88] sm:$0xff]
    %v140 = vld [vmem:[%s3 + $0x90] sm:$0xff]
    %v141 = vld [vmem:[%s3 + $0x98] sm:$0xff]
    %v142 = vld [vmem:[%s3 + $0xa0] sm:$0xff]
    %v143 = vld [vmem:[%s3 + $0xa8] sm:$0xff]
    %v144 = vld [vmem:[%s3 + $0xb0] sm:$0xff]
    %v145 = vld [vmem:[%s3 + $0xb8] sm:$0xff]
    %v146 = vld [vmem:[%s3 + $0xc0] sm:$0xff]
    %v147 = vld [vmem:[%s3 + $0xc8] sm:$0xff]
    %v148 = vld [vmem:[%s3 + $0xd0] sm:$0xff]
    %v149 = vld [vmem:[%s3 + $0xd8] sm:$0xff]
    %v150 = vld [vmem:[%s3 + $0xe0] sm:$0xff]
    %v151 = vld [vmem:[%s3 + $0xe8] sm:$0xff]
    %v152 = vld [vmem:[%s3 + $0xf0] sm:$0xff]
    %v153 = vld [vmem:[%s3 + $0xf8] sm:$0xff]
    %v154 = vld [vmem:[%s4] sm:$0x1]
    %v156 = vlaneseq
    %v157 = vshrl.u32 %v156, 7
    %v158 = vsub.s32 0, %v157
    %v159 = vrot.slane %v154, %v158
    %161 = vmatprep.subr.mxu0 0.0
    %162 = vmatpush1.msra.mxu0 %v137
    %163 = vmatprep.subr.mxu0 0.0
    %164 = vmatpush1.msra.mxu0 %v136
    %165 = vmatprep.subr.mxu0 0.0
    %166 = vmatpush1.msra.mxu0 %v135
    %167 = vmatprep.subr.mxu0 0.0
    %168 = vmatpush1.msra.mxu0 %v134
    %169 = vmatprep.subr.mxu0 0.0
    %170 = vmatpush1.msra.mxu0 %v133
    %171 = vmatprep.subr.mxu0 0.0
    %172 = vmatpush1.msra.mxu0 %v132
    %173 = vmatprep.subr.mxu0 0.0
    %174 = vmatpush1.msra.mxu0 %v131
    %175 = vmatprep.subr.mxu0 0.0
    %176 = vmatpush1.msra.mxu0 %v130
    %177 = vmatprep.subr.mxu0 0.0
    %178 = vmatpush1.msra.mxu0 %v129
    %179 = vmatprep.subr.mxu0 0.0
    %180 = vmatpush1.msra.mxu0 %v128
    %181 = vmatprep.subr.mxu0 0.0
    %182 = vmatpush1.msra.mxu0 %v127
    %183 = vmatprep.subr.mxu0 0.0
    %184 = vmatpush1.msra.mxu0 %v126
    %185 = vmatprep.subr.mxu0 0.0
    %186 = vmatpush1.msra.mxu0 %v125
    %187 = vmatprep.subr.mxu0 0.0
    %188 = vmatpush1.msra.mxu0 %v124
    %189 = vmatprep.subr.mxu0 0.0
    %190 = vmatpush1.msra.mxu0 %v123
    %191 = vmatprep.subr.mxu0 0.0
    %192 = vmatpush1.msra.mxu0 %v122
    %193 = vmatprep.subr.mxu0 0.0
    %194 = vmatpush2.msra.mxu0 %v153
    %195 = vmatprep.subr.mxu0 0.0
    %196 = vmatpush2.msra.mxu0 %v152
    %197 = vmatprep.subr.mxu0 0.0
    %198 = vmatpush2.msra.mxu0 %v151
    %199 = vmatprep.subr.mxu0 0.0
    %200 = vmatpush2.msra.mxu0 %v150
    %201 = vmatprep.subr.mxu0 0.0
    %202 = vmatpush2.msra.mxu0 %v149
    %203 = vmatprep.subr.mxu0 0.0
    %204 = vmatpush2.msra.mxu0 %v148
    %205 = vmatprep.subr.mxu0 0.0
    %206 = vmatpush2.msra.mxu0 %v147
    %207 = vmatprep.subr.mxu0 0.0
    %208 = vmatpush2.msra.mxu0 %v146
    %209 = vmatprep.subr.mxu0 0.0
    %210 = vmatpush2.msra.mxu0 %v145
    %211 = vmatprep.subr.mxu0 0.0
    %212 = vmatpush2.msra.mxu0 %v144
    %213 = vmatprep.subr.mxu0 0.0
    %214 = vmatpush2.msra.mxu0 %v143
    %215 = vmatprep.subr.mxu0 0.0
    %216 = vmatpush2.msra.mxu0 %v142
    %217 = vmatprep.subr.mxu0 0.0
    %218 = vmatpush2.msra.mxu0 %v141
    %219 = vmatprep.subr.mxu0 0.0
    %220 = vmatpush2.msra.mxu0 %v140
    %221 = vmatprep.subr.mxu0 0.0
    %222 = vmatpush2.msra.mxu0 %v139
    %223 = vmatprep.subr.mxu0 0.0
    %224 = vmatpush2.msra.mxu0 %v138
    %225 = vmatprep.mubr.f32.mxu0 %v121
    %226 = vmatmul.mubr.f32.gmra.mxu0 %v120
    %v227 = vpop.f32.mrf.mxu0
    %v228 = vadd.f32 %v159, %v227
    %v229 = vpop.f32.mrf.mxu0
    %230 = vdwg.mxu0
    %vm231 = vcmask 17408
    %232 = vst.msk [vmem:[#allocation2] sm:$0x3] %vm231, %v228
    // Predicated region
    $region22: #{qnet_forward.1} parent=1 // pred_check
      _
    $region23: #{qnet_forward.1} parent=1 // pred_check_branch
      %234 = sbr.rel (0) target = $region25
    $region24: #{qnet_forward.1} parent=1 // pred_region
      %s236 = ssub.s32 32, 32
      %237 = vsyncadd [#allocation3], %s236
      %s239 = sshll.u32 [#allocation2], 4
      %s240 = int_to_ptr.vmem [resolvable:$true] %s239
      %242 = dma.vmem_to_hbm [thread:$0]  %s240, 32, %s5, [#allocation3]
    $region25: #{qnet_forward.1} parent=1 // pred_fallthru
      _
    // Predicated region
    $region26: #{qnet_forward.1} parent=1 // pred_check
      _
    $region27: #{qnet_forward.1} parent=1 // pred_check_branch
      %244 = sbr.rel (0) target = $region29
    $region28: #{qnet_forward.1} parent=1 // pred_region
      %245 = dma.done [#allocation3], 32
    $region29: #{qnet_forward.1} parent=1 // pred_fallthru
      _
    %246 = vsyncpa [#allocation3], 1

</llo_original>
